<compile_context>
chip_gen: v6e
topology: v6e:2x2x1
jax: 0.10.0
libtpu: 0.0.40
codegen_flags: <defaults>
</compile_context>

<pallas_src>
import functools

import jax
import jax.numpy as jnp
from jax.experimental import pallas as pl
from jax.experimental.pallas import tpu as pltpu


def _round_up(n: int, m: int) -> int:
    return ((n + m - 1) // m) * m


@functools.lru_cache(maxsize=None)
def _vmem_limit_bytes() -> int:
    """~3/4 of physical VMEM: ~48 MiB on v7x (64 MiB), ~96 MiB on v5e/v6e (128 MiB)."""
    cap = 64 * 1024 * 1024
    try:
        info = pltpu.get_tpu_info()
        cap = int(getattr(info, "vmem_capacity_bytes", cap))
    except Exception:
        pass
    return min((cap * 3) // 4, 100 * 1024 * 1024)


@functools.lru_cache(maxsize=None)
def _has_bf16_vpu() -> bool:
    """v6e/v7x have bf16 VPU/EUP; v5e and older do not (keep f32 elementwise there)."""
    try:
        kind = jax.devices()[0].device_kind.lower()
    except Exception:
        return False
    return not any(g in kind for g in ("v2", "v3", "v4", "v5"))


def _lancer_kernel(n_hidden, bf16_act, zp_ref, zt_ref, *refs):
    """LANCER MLP forward for one batch tile.

    refs = (W1, b1, ..., Wn, bn, W_out, b_out, out_ref).
    Weights may be bf16 (MXU operands); biases are f32; MXU accumulates in f32.
    """
    out_ref = refs[-1]
    params = refs[:-1]

    # input = square(z_true - z_pred)   (VPU, f32)
    x = jnp.square(zt_ref[...] - zp_ref[...])

    # hidden layers: tanh(x @ W + b)
    for i in range(n_hidden):
        w = params[2 * i][...]
        b = params[2 * i + 1][...]
        y = jnp.dot(x.astype(w.dtype), w, preferred_element_type=jnp.float32) + b
        # bf16 bias-add/tanh on chips with bf16 VPU/EUP (halves EUP traffic and
        # removes the pre-matmul cast); f32 path on v5e and older.
        x = jnp.tanh(y.astype(jnp.bfloat16)) if bf16_act else jnp.tanh(y)

    # output layer: relu(x @ W_out + b_out), stored at natural (tb, f_dim) width.
    w = params[-2][...]
    b = params[-1][...]
    y = jnp.dot(x.astype(w.dtype), w, preferred_element_type=jnp.float32) + b
    out_ref[...] = jnp.maximum(y, 0.0).astype(out_ref.dtype)


def prepare_params(params, use_bf16=True):
    """One-time parameter prep, hoisted out of the per-call hot path.

    params: list of (W, b) with W:(in, out) f32 (PyTorch W.T layout), b:(out,) or
    (1, out) f32.  Returns a flat tuple (W1, b1, ..., W_out, b_out); W cast to bf16
    when use_bf16 (fast MXU operand path), biases kept as (1, out) f32.
    """
    w_dtype = jnp.bfloat16 if use_bf16 else jnp.float32
    flat = []
    for (w, b) in params:
        flat.append(jnp.asarray(w, w_dtype))
        flat.append(jnp.asarray(b, jnp.float32).reshape(1, -1))
    return tuple(flat)


@functools.partial(jax.jit, static_argnames=("batch_tile", "bf16_activations"))
def mlp_lancer_forward(z_pred, z_true, flat_params, *, batch_tile=1024,
                       bf16_activations=None):
    """flat_params: output of prepare_params().  Returns (batch, f_dim) f32."""
    assert z_pred.shape == z_true.shape and z_pred.ndim == 2
    batch, z_dim = z_pred.shape
    assert z_dim == flat_params[0].shape[0], "feature dim mismatch vs params"
    f_dim = flat_params[-2].shape[1]
    n_hidden = len(flat_params) // 2 - 1

    if bf16_activations is None:
        bf16_activations = _has_bf16_vpu()

    zp = z_pred.astype(jnp.float32)
    zt = z_true.astype(jnp.float32)

    # ---- batch tiling: tiles are multiples of 8 (or the full batch), no feature
    #      padding anywhere; keep the grid >= 2 when batch allows it so the
    #      "parallel" axis can shard across v7x's two TensorCores.
    if batch < 8:
        tb = batch                                    # full-extent block (legal)
    else:
        tb = min(_round_up(batch_tile, 8), (batch // 8) * 8)
        if batch % tb != 0 and batch <= _round_up(batch_tile, 8):
            tb = batch                                # one full-extent block, no ragged tail
    grid = pl.cdiv(batch, tb)
    if grid == 1 and batch >= 16:
        tb = _round_up(pl.cdiv(batch, 2), 8)          # even grid for v7x megacore
        grid = pl.cdiv(batch, tb)

    kernel = functools.partial(_lancer_kernel, n_hidden, bool(bf16_activations))

    in_specs = [
        pl.BlockSpec((tb, z_dim), lambda i: (i, 0)),  # z_pred: streamed per batch tile
        pl.BlockSpec((tb, z_dim), lambda i: (i, 0)),  # z_true: streamed per batch tile
    ]
    for p in flat_params:
        # Weights/biases: full-extent blocks with a constant index map -> fetched
        # once, VMEM-resident across all grid steps.
        # TODO(synk): for layer_size too large for full residency (esp. v7x's 64 MiB
        # VMEM) add a K/N-tiled "arbitrary" grid axis with an f32 accumulator
        # scratch, and single-buffer the resident params (pl.Buffered(1)).
        in_specs.append(pl.BlockSpec(p.shape, lambda i: (0, 0)))

    return pl.pallas_call(
        kernel,
        out_shape=jax.ShapeDtypeStruct((batch, f_dim), jnp.float32),
        grid=(grid,),
        in_specs=in_specs,
        out_specs=pl.BlockSpec((tb, f_dim), lambda i: (i, 0)),
        compiler_params=pltpu.CompilerParams(
            dimension_semantics=("parallel",),        # megacore sharding on v7x
            vmem_limit_bytes=_vmem_limit_bytes(),     # generation-aware limit
        ),
    )(zp, zt, *flat_params)


def init_params(key, z_dim, f_dim, n_layers, layer_size):
    """U(-1/sqrt(fan_in), 1/sqrt(fan_in)) init, mimicking torch.nn.Linear."""
    params = []
    in_size = z_dim
    for out_size in [layer_size] * n_layers + [f_dim]:
        key, kw, kb = jax.random.split(key, 3)
        bound = 1.0 / float(in_size) ** 0.5
        w = jax.random.uniform(kw, (in_size, out_size), jnp.float32, -bound, bound)
        b = jax.random.uniform(kb, (1, out_size), jnp.float32, -bound, bound)
        params.append((w, b))
        in_size = out_size
    return params


def reference_forward(z_pred, z_true, params):
    """Pure-JAX reference (HIGHEST-precision matmuls as the gold standard)."""
    hi = jax.lax.Precision.HIGHEST
    x = jnp.square(z_true - z_pred)
    for (w, b) in params[:-1]:
        x = jnp.tanh(jnp.dot(x, w, precision=hi) + b)
    w, b = params[-1]
    return jnp.maximum(jnp.dot(x, w, precision=hi) + b, 0.0)


if __name__ == "__main__":
    # Shapes consistent with MLPLancer(z_dim=16, f_dim=8, n_layers=2, layer_size=32)
    batch, z_dim, f_dim, n_layers, layer_size = 8, 16, 8, 2, 32

    key = jax.random.PRNGKey(0)
    key, kp, kt = jax.random.split(key, 3)
    z_pred = jax.random.normal(kp, (batch, z_dim), jnp.float32)
    z_true = jax.random.normal(kt, (batch, z_dim), jnp.float32)

    params = init_params(key, z_dim, f_dim, n_layers, layer_size)
    ref = reference_forward(z_pred, z_true, params)

    # f32-operand path: validates the grid / indexing logic.  Tolerance covers the
    # MXU's default-precision f32 matmul behaviour (bf16 passes) vs the HIGHEST
    # precision reference; an indexing bug would produce O(1) errors.
    p_f32 = prepare_params(params, use_bf16=False)
    out_f32 = jax.block_until_ready(
        mlp_lancer_forward(z_pred, z_true, p_f32, bf16_activations=False))
    assert out_f32.shape == (batch, f_dim)
    assert jnp.allclose(out_f32, ref, atol=3e-2, rtol=3e-2), "f32 path mismatch"

    # Multi-step grid (streamed batch tiles) on the f32 path.
    k2 = jax.random.split(key, 2)
    zp2 = jax.random.normal(k2[0], (64, z_dim), jnp.float32)
    zt2 = jax.random.normal(k2[1], (64, z_dim), jnp.float32)
    ref2 = reference_forward(zp2, zt2, params)
    out2 = jax.block_until_ready(
        mlp_lancer_forward(zp2, zt2, p_f32, batch_tile=16, bf16_activations=False))
    assert out2.shape == (64, f_dim)
    assert jnp.allclose(out2, ref2, atol=3e-2, rtol=3e-2), "tiled f32 path mismatch"

    # bf16 fast path (bf16 MXU operands; bf16 tanh on v6e/v7x): looser tolerance is
    # the documented precision tradeoff of the fast path, not a bug.
    p_bf16 = prepare_params(params, use_bf16=True)
    out_bf16 = jax.block_until_ready(mlp_lancer_forward(z_pred, z_true, p_bf16))
    assert out_bf16.shape == (batch, f_dim)
    assert jnp.allclose(out_bf16, ref, atol=1e-1, rtol=1e-1), "bf16 path mismatch"

    print("KERNEL_OK")
</pallas_src>

<mosaic_0001>
module attributes {stable_mosaic.version = 11 : i64} {
  func.func @_lancer_kernel(%arg0: i32, %arg1: memref<8x16xf32, #tpu.memory_space<vmem>>, %arg2: memref<8x16xf32, #tpu.memory_space<vmem>>, %arg3: memref<16x32xf32, #tpu.memory_space<vmem>>, %arg4: memref<1x32xf32, #tpu.memory_space<vmem>>, %arg5: memref<32x32xf32, #tpu.memory_space<vmem>>, %arg6: memref<1x32xf32, #tpu.memory_space<vmem>>, %arg7: memref<32x8xf32, #tpu.memory_space<vmem>>, %arg8: memref<1x8xf32, #tpu.memory_space<vmem>>, %arg9: memref<8x8xf32, #tpu.memory_space<vmem>>) attributes {dimension_semantics = [#tpu.dimension_semantics<parallel>], iteration_bounds = array<i64: 1>, scalar_prefetch = 0 : i64, scratch_operands = 0 : i64, tpu.core_type = #tpu.core_type<tc>, window_params = [{transform_indices = @transform_0, window_bounds = array<i64: 8, 16>}, {transform_indices = @transform_1, window_bounds = array<i64: 8, 16>}, {pipeline_mode = #tpu.pipeline_mode<synchronous>, transform_indices = @transform_2, window_bounds = array<i64: 16, 32>}, {pipeline_mode = #tpu.pipeline_mode<synchronous>, transform_indices = @transform_3, window_bounds = array<i64: 1, 32>}, {pipeline_mode = #tpu.pipeline_mode<synchronous>, transform_indices = @transform_4, window_bounds = array<i64: 32, 32>}, {pipeline_mode = #tpu.pipeline_mode<synchronous>, transform_indices = @transform_5, window_bounds = array<i64: 1, 32>}, {pipeline_mode = #tpu.pipeline_mode<synchronous>, transform_indices = @transform_6, window_bounds = array<i64: 32, 8>}, {pipeline_mode = #tpu.pipeline_mode<synchronous>, transform_indices = @transform_7, window_bounds = array<i64: 1, 8>}, {transform_indices = @transform_8, window_bounds = array<i64: 8, 8>}]} {
    %c0 = arith.constant 0 : index
    %c0_0 = arith.constant 0 : index
    %0 = vector.load %arg2[%c0, %c0_0] : memref<8x16xf32, #tpu.memory_space<vmem>>, vector<8x16xf32>
    %c0_1 = arith.constant 0 : index
    %c0_2 = arith.constant 0 : index
    %1 = vector.load %arg1[%c0_1, %c0_2] : memref<8x16xf32, #tpu.memory_space<vmem>>, vector<8x16xf32>
    %2 = arith.subf %0, %1 : vector<8x16xf32>
    %3 = arith.mulf %2, %2 : vector<8x16xf32>
    %c0_3 = arith.constant 0 : index
    %c0_4 = arith.constant 0 : index
    %4 = vector.load %arg3[%c0_3, %c0_4] : memref<16x32xf32, #tpu.memory_space<vmem>>, vector<16x32xf32>
    %c0_5 = arith.constant 0 : index
    %c0_6 = arith.constant 0 : index
    %5 = vector.load %arg4[%c0_5, %c0_6] : memref<1x32xf32, #tpu.memory_space<vmem>>, vector<1x32xf32>
    %cst = arith.constant dense<0.000000e+00> : vector<8x32xf32>
    %6 = tpu.matmul %3, %4, %cst {dimension_numbers = #tpu.dot_dimension_numbers<[1], [0], [0], [1], [0, 0, 1, 1], [], []>} : vector<8x16xf32>, vector<16x32xf32>, vector<8x32xf32> -> vector<8x32xf32>
    %7 = vector.broadcast %5 : vector<1x32xf32> to vector<8x32xf32>
    %8 = arith.addf %6, %7 : vector<8x32xf32>
    %9 = math.tanh %8 : vector<8x32xf32>
    %c0_7 = arith.constant 0 : index
    %c0_8 = arith.constant 0 : index
    %10 = vector.load %arg5[%c0_7, %c0_8] : memref<32x32xf32, #tpu.memory_space<vmem>>, vector<32x32xf32>
    %c0_9 = arith.constant 0 : index
    %c0_10 = arith.constant 0 : index
    %11 = vector.load %arg6[%c0_9, %c0_10] : memref<1x32xf32, #tpu.memory_space<vmem>>, vector<1x32xf32>
    %cst_11 = arith.constant dense<0.000000e+00> : vector<8x32xf32>
    %12 = tpu.matmul %9, %10, %cst_11 {dimension_numbers = #tpu.dot_dimension_numbers<[1], [0], [0], [1], [0, 0, 1, 1], [], []>} : vector<8x32xf32>, vector<32x32xf32>, vector<8x32xf32> -> vector<8x32xf32>
    %13 = vector.broadcast %11 : vector<1x32xf32> to vector<8x32xf32>
    %14 = arith.addf %12, %13 : vector<8x32xf32>
    %15 = math.tanh %14 : vector<8x32xf32>
    %c0_12 = arith.constant 0 : index
    %c0_13 = arith.constant 0 : index
    %16 = vector.load %arg7[%c0_12, %c0_13] : memref<32x8xf32, #tpu.memory_space<vmem>>, vector<32x8xf32>
    %c0_14 = arith.constant 0 : index
    %c0_15 = arith.constant 0 : index
    %17 = vector.load %arg8[%c0_14, %c0_15] : memref<1x8xf32, #tpu.memory_space<vmem>>, vector<1x8xf32>
    %cst_16 = arith.constant dense<0.000000e+00> : vector<8x8xf32>
    %18 = tpu.matmul %15, %16, %cst_16 {dimension_numbers = #tpu.dot_dimension_numbers<[1], [0], [0], [1], [0, 0, 1, 1], [], []>} : vector<8x32xf32>, vector<32x8xf32>, vector<8x8xf32> -> vector<8x8xf32>
    %19 = vector.broadcast %17 : vector<1x8xf32> to vector<8x8xf32>
    %20 = arith.addf %18, %19 : vector<8x8xf32>
    %cst_17 = arith.constant 0.000000e+00 : f32
    %21 = vector.broadcast %cst_17 : f32 to vector<8x8xf32>
    %22 = arith.maximumf %20, %21 : vector<8x8xf32>
    %c0_18 = arith.constant 0 : index
    %c0_19 = arith.constant 0 : index
    %23 = vector.load %arg9[%c0_18, %c0_19] : memref<8x8xf32, #tpu.memory_space<vmem>>, vector<8x8xf32>
    tpu.vector_store %arg9[%c0_18, %c0_19], %22 {strides = array<i32>} : memref<8x8xf32, #tpu.memory_space<vmem>>, vector<8x8xf32>,
    return
  }
  func.func @transform_0(%arg0: i32) -> (i32, i32) {
    %c0_i32 = arith.constant 0 : i32
    %c0_i32_0 = arith.constant 0 : i32
    return %arg0, %c0_i32 : i32, i32
  }
  func.func @transform_1(%arg0: i32) -> (i32, i32) {
    %c0_i32 = arith.constant 0 : i32
    %c0_i32_0 = arith.constant 0 : i32
    return %arg0, %c0_i32 : i32, i32
  }
  func.func @transform_2(%arg0: i32) -> (i32, i32) {
    %c0_i32 = arith.constant 0 : i32
    %c0_i32_0 = arith.constant 0 : i32
    %c0_i32_1 = arith.constant 0 : i32
    return %c0_i32, %c0_i32_0 : i32, i32
  }
  func.func @transform_3(%arg0: i32) -> (i32, i32) {
    %c0_i32 = arith.constant 0 : i32
    %c0_i32_0 = arith.constant 0 : i32
    %c0_i32_1 = arith.constant 0 : i32
    return %c0_i32, %c0_i32_0 : i32, i32
  }
  func.func @transform_4(%arg0: i32) -> (i32, i32) {
    %c0_i32 = arith.constant 0 : i32
    %c0_i32_0 = arith.constant 0 : i32
    %c0_i32_1 = arith.constant 0 : i32
    return %c0_i32, %c0_i32_0 : i32, i32
  }
  func.func @transform_5(%arg0: i32) -> (i32, i32) {
    %c0_i32 = arith.constant 0 : i32
    %c0_i32_0 = arith.constant 0 : i32
    %c0_i32_1 = arith.constant 0 : i32
    return %c0_i32, %c0_i32_0 : i32, i32
  }
  func.func @transform_6(%arg0: i32) -> (i32, i32) {
    %c0_i32 = arith.constant 0 : i32
    %c0_i32_0 = arith.constant 0 : i32
    %c0_i32_1 = arith.constant 0 : i32
    return %c0_i32, %c0_i32_0 : i32, i32
  }
  func.func @transform_7(%arg0: i32) -> (i32, i32) {
    %c0_i32 = arith.constant 0 : i32
    %c0_i32_0 = arith.constant 0 : i32
    %c0_i32_1 = arith.constant 0 : i32
    return %c0_i32, %c0_i32_0 : i32, i32
  }
  func.func @transform_8(%arg0: i32) -> (i32, i32) {
    %c0_i32 = arith.constant 0 : i32
    %c0_i32_0 = arith.constant 0 : i32
    return %arg0, %c0_i32 : i32, i32
  }
}

</mosaic_0001>

<llo_original>
// kernel: mlp_lancer_forward.1
$region0: #{mlp_lancer_forward.1}
  #allocation0 [shape = 'u32[]', space=smem, size = 0x4, offset = 0x4, fixed_abs, tag = 'smem constant byte address 0x4 - core index']
  #allocation1 [shape = 'u32[144,128]{1,0:T(1,128)}', space=vmem, size = 0x12000, scoped, tag = 'internal scratch']
  %s0 = inlined_call_operand.vmem [shape: f32[8,16], index: 0, kind: input, shape index: {}]
  %s1 = inlined_call_operand.hbm [shape: f32[8,16], index: 1, kind: input, shape index: {}]
  %s2 = inlined_call_operand.hbm [shape: f32[16,32], index: 2, kind: input, shape index: {}]
  %s3 = inlined_call_operand.vmem [shape: f32[1,32], index: 3, kind: input, shape index: {}]
  %s4 = inlined_call_operand.vmem [shape: f32[32,32], index: 4, kind: input, shape index: {}]
  %s5 = inlined_call_operand.vmem [shape: f32[1,32], index: 5, kind: input, shape index: {}]
  %s6 = inlined_call_operand.vmem [shape: f32[32,8], index: 6, kind: input, shape index: {}]
  %s7 = inlined_call_operand.vmem [shape: f32[1,8], index: 7, kind: input, shape index: {}]
  %s8 = inlined_call_operand.hbm [shape: f32[8,8], index: 8, kind: output, shape index: {}]
  %s9 = sld [smem:[#allocation0]]
  $region50: #{mlp_lancer_forward.1} parent=0
    _
  %s11 = ssub.s32 1, %s9
  %s12 = scalar_select 0, %s11, %s9
  $region1: #{mlp_lancer_forward.1} parent=0
    #allocation2 [shape = 'u8[4096]{0}', space=vmem, size = 0x1000, scoped, tag = 'input window, operand 1, single buffered']
    #allocation3 [shape = 's32[1]{0}', space=sflag, size = 0x4, scoped, tag = 'scoped memory for mlp_lancer_forward.1']
    #allocation4 [shape = 's32[1]{0}', space=sflag, size = 0x4, scoped, tag = 'scoped memory for mlp_lancer_forward.1']
    #allocation5 [shape = 'u8[8192]{0}', space=vmem, size = 0x2000, scoped, tag = 'input window, operand 2, single buffered']
    #allocation6 [shape = 's32[1]{0}', space=sflag, size = 0x4, scoped, tag = 'scoped memory for mlp_lancer_forward.1']
    #allocation7 [shape = 'u8[4096]{0}', space=vmem, size = 0x1000, scoped, tag = 'output window, operand 0, single buffered']
    %13 = vsyncpa [#allocation3], 0
    %14 = vsyncpa [#allocation6], 0
    %15 = vsyncpa [#allocation4], 0
    // Predicated region
    $region2: #{mlp_lancer_forward.1} parent=1 // pred_check
      _
    $region3: #{mlp_lancer_forward.1} parent=1 // pred_check_branch
      %17 = sbr.rel (0) target = $region5
    $region4: #{mlp_lancer_forward.1} parent=1 // pred_region
      _
    $region5: #{mlp_lancer_forward.1} parent=1 // pred_fallthru
      _
    // Predicated region
    $region6: #{mlp_lancer_forward.1} parent=1 // pred_check
      _
    $region7: #{mlp_lancer_forward.1} parent=1 // pred_check_branch
      %19 = sbr.rel (0) target = $region9
    $region8: #{mlp_lancer_forward.1} parent=1 // pred_region
      %s21 = ssub.s32 128, 128
      %22 = vsyncadd [#allocation3], %s21
      %s24 = sshll.u32 [#allocation2], 4
      %s25 = int_to_ptr.vmem [resolvable:$true] %s24
      %27 = dma.hbm_to_vmem [thread:$0]  %s1, 128, %s25, [#allocation3]
    $region9: #{mlp_lancer_forward.1} parent=1 // pred_fallthru
      _
    // Predicated region
    $region10: #{mlp_lancer_forward.1} parent=1 // pred_check
      _
    $region11: #{mlp_lancer_forward.1} parent=1 // pred_check_branch
      %29 = sbr.rel (0) target = $region13
    $region12: #{mlp_lancer_forward.1} parent=1 // pred_region
      %s31 = ssub.s32 256, 256
      %32 = vsyncadd [#allocation6], %s31
      %s33 = sshll.u32 [#allocation5], 4
      %s34 = int_to_ptr.vmem [resolvable:$true] %s33
      %39 = dma.hbm_to_vmem [thread:$0]  %s2, 256, %s34, [#allocation6], 128, 128, 8
    $region13: #{mlp_lancer_forward.1} parent=1 // pred_fallthru
      _
    // Predicated region
    $region14: #{mlp_lancer_forward.1} parent=1 // pred_check
      _
    $region15: #{mlp_lancer_forward.1} parent=1 // pred_check_branch
      %41 = sbr.rel (0) target = $region17
    $region16: #{mlp_lancer_forward.1} parent=1 // pred_region
      _
    $region17: #{mlp_lancer_forward.1} parent=1 // pred_fallthru
      _
    // Predicated region
    $region18: #{mlp_lancer_forward.1} parent=1 // pred_check
      _
    $region19: #{mlp_lancer_forward.1} parent=1 // pred_check_branch
      %43 = sbr.rel (0) target = $region21
    $region20: #{mlp_lancer_forward.1} parent=1 // pred_region
      _
    $region21: #{mlp_lancer_forward.1} parent=1 // pred_fallthru
      _
    // Predicated region
    $region22: #{mlp_lancer_forward.1} parent=1 // pred_check
      _
    $region23: #{mlp_lancer_forward.1} parent=1 // pred_check_branch
      %45 = sbr.rel (0) target = $region25
    $region24: #{mlp_lancer_forward.1} parent=1 // pred_region
      _
    $region25: #{mlp_lancer_forward.1} parent=1 // pred_fallthru
      _
    // Predicated region
    $region26: #{mlp_lancer_forward.1} parent=1 // pred_check
      _
    $region27: #{mlp_lancer_forward.1} parent=1 // pred_check_branch
      %47 = sbr.rel (0) target = $region29
    $region28: #{mlp_lancer_forward.1} parent=1 // pred_region
      _
    $region29: #{mlp_lancer_forward.1} parent=1 // pred_fallthru
      _
    // Predicated region
    $region30: #{mlp_lancer_forward.1} parent=1 // pred_check
      _
    $region31: #{mlp_lancer_forward.1} parent=1 // pred_check_branch
      %49 = sbr.rel (0) target = $region33
    $region32: #{mlp_lancer_forward.1} parent=1 // pred_region
      _
    $region33: #{mlp_lancer_forward.1} parent=1 // pred_fallthru
      _
    // Predicated region
    $region34: #{mlp_lancer_forward.1} parent=1 // pred_check
      _
    $region35: #{mlp_lancer_forward.1} parent=1 // pred_check_branch
      %51 = sbr.rel (0) target = $region37
    $region36: #{mlp_lancer_forward.1} parent=1 // pred_region
      %52 = dma.done [#allocation3], 128
    $region37: #{mlp_lancer_forward.1} parent=1 // pred_fallthru
      _
    // Predicated region
    $region38: #{mlp_lancer_forward.1} parent=1 // pred_check
      _
    $region39: #{mlp_lancer_forward.1} parent=1 // pred_check_branch
      %54 = sbr.rel (0) target = $region41
    $region40: #{mlp_lancer_forward.1} parent=1 // pred_region
      %55 = dma.done [#allocation6], 256
    $region41: #{mlp_lancer_forward.1} parent=1 // pred_fallthru
      _
    %v56 = vld [vmem:[#allocation2] sm:$0xff]
    %v57 = vld [vmem:[%s0] sm:$0xff]
    %v58 = vsub.f32 %v56, %v57
    %v59 = vmul.f32 %v58, %v58
    %v60 = vld [vmem:[#allocation5] sm:$0xff]
    %v61 = vld [vmem:[#allocation5 + $0x8] sm:$0xff]
    %v62 = vld [vmem:[%s3] sm:$0x1]
    %v64 = vlaneseq
    %v65 = vshrl.u32 %v64, 7
    %v66 = vsub.s32 0, %v65
    %v67 = vrot.slane %v62, %v66
    %vm69 = vcmask 130048
    %v71 = vsel %vm69, %v59, 0
    %73 = vmatprep.subr.mxu0 0.0
    %74 = vmatpush1.msra.mxu0 0.0
    %75 = vmatprep.subr.mxu0 0.0
    %76 = vmatpush1.msra.mxu0 0.0
    %77 = vmatprep.subr.mxu0 0.0
    %78 = vmatpush1.msra.mxu0 0.0
    %79 = vmatprep.subr.mxu0 0.0
    %80 = vmatpush1.msra.mxu0 0.0
    %81 = vmatprep.subr.mxu0 0.0
    %82 = vmatpush1.msra.mxu0 0.0
    %83 = vmatprep.subr.mxu0 0.0
    %84 = vmatpush1.msra.mxu0 0.0
    %85 = vmatprep.subr.mxu0 0.0
    %86 = vmatpush1.msra.mxu0 0.0
    %87 = vmatprep.subr.mxu0 0.0
    %88 = vmatpush1.msra.mxu0 0.0
    %89 = vmatprep.subr.mxu0 0.0
    %90 = vmatpush1.msra.mxu0 0.0
    %91 = vmatprep.subr.mxu0 0.0
    %92 = vmatpush1.msra.mxu0 0.0
    %93 = vmatprep.subr.mxu0 0.0
    %94 = vmatpush1.msra.mxu0 0.0
    %95 = vmatprep.subr.mxu0 0.0
    %96 = vmatpush1.msra.mxu0 0.0
    %97 = vmatprep.subr.mxu0 0.0
    %98 = vmatpush1.msra.mxu0 0.0
    %99 = vmatprep.subr.mxu0 0.0
    %100 = vmatpush1.msra.mxu0 0.0
    %101 = vmatprep.subr.mxu0 0.0
    %102 = vmatpush1.msra.mxu0 %v61
    %103 = vmatprep.subr.mxu0 0.0
    %104 = vmatpush1.msra.mxu0 %v60
    %105 = vmatprep.subr.mxu0 0.0
    %106 = vmatpush2.msra.mxu0 0.0
    %107 = vmatprep.subr.mxu0 0.0
    %108 = vmatpush2.msra.mxu0 0.0
    %109 = vmatprep.subr.mxu0 0.0
    %110 = vmatpush2.msra.mxu0 0.0
    %111 = vmatprep.subr.mxu0 0.0
    %112 = vmatpush2.msra.mxu0 0.0
    %113 = vmatprep.subr.mxu0 0.0
    %114 = vmatpush2.msra.mxu0 0.0
    %115 = vmatprep.subr.mxu0 0.0
    %116 = vmatpush2.msra.mxu0 0.0
    %117 = vmatprep.subr.mxu0 0.0
    %118 = vmatpush2.msra.mxu0 0.0
    %119 = vmatprep.subr.mxu0 0.0
    %120 = vmatpush2.msra.mxu0 0.0
    %121 = vmatprep.subr.mxu0 0.0
    %122 = vmatpush2.msra.mxu0 0.0
    %123 = vmatprep.subr.mxu0 0.0
    %124 = vmatpush2.msra.mxu0 0.0
    %125 = vmatprep.subr.mxu0 0.0
    %126 = vmatpush2.msra.mxu0 0.0
    %127 = vmatprep.subr.mxu0 0.0
    %128 = vmatpush2.msra.mxu0 0.0
    %129 = vmatprep.subr.mxu0 0.0
    %130 = vmatpush2.msra.mxu0 0.0
    %131 = vmatprep.subr.mxu0 0.0
    %132 = vmatpush2.msra.mxu0 0.0
    %133 = vmatprep.subr.mxu0 0.0
    %134 = vmatpush2.msra.mxu0 0.0
    %135 = vmatprep.subr.mxu0 0.0
    %136 = vmatpush2.msra.mxu0 0.0
    %137 = vmatprep.mubr.f32.mxu0 0.0
    %138 = vmatmul.mubr.f32.gmra.mxu0 %v71
    %v139 = vpop.f32.mrf.mxu0
    %v140 = vadd.f32 %v67, %v139
    %v141 = vpop.f32.mrf.mxu0
    %142 = vdwg.mxu0
    %v143 = vtanh.pop %v140
    %v144 = vld [vmem:[%s4] sm:$0xff]
    %v145 = vld [vmem:[%s4 + $0x8] sm:$0xff]
    %v146 = vld [vmem:[%s4 + $0x10] sm:$0xff]
    %v147 = vld [vmem:[%s4 + $0x18] sm:$0xff]
    %v148 = vld [vmem:[%s5] sm:$0x1]
    %v150 = vlaneseq
    %v151 = vshrl.u32 %v150, 7
    %v152 = vsub.s32 0, %v151
    %v153 = vrot.slane %v148, %v152
    %vm155 = vcmask 261120
    %v157 = vsel %vm155, %v143, 0
    %159 = vmatprep.subr.mxu0 0.0
    %160 = vmatpush1.msra.mxu0 0.0
    %161 = vmatprep.subr.mxu0 0.0
    %162 = vmatpush1.msra.mxu0 0.0
    %163 = vmatprep.subr.mxu0 0.0
    %164 = vmatpush1.msra.mxu0 0.0
    %165 = vmatprep.subr.mxu0 0.0
    %166 = vmatpush1.msra.mxu0 0.0
    %167 = vmatprep.subr.mxu0 0.0
    %168 = vmatpush1.msra.mxu0 0.0
    %169 = vmatprep.subr.mxu0 0.0
    %170 = vmatpush1.msra.mxu0 0.0
    %171 = vmatprep.subr.mxu0 0.0
    %172 = vmatpush1.msra.mxu0 0.0
    %173 = vmatprep.subr.mxu0 0.0
    %174 = vmatpush1.msra.mxu0 0.0
    %175 = vmatprep.subr.mxu0 0.0
    %176 = vmatpush1.msra.mxu0 0.0
    %177 = vmatprep.subr.mxu0 0.0
    %178 = vmatpush1.msra.mxu0 0.0
    %179 = vmatprep.subr.mxu0 0.0
    %180 = vmatpush1.msra.mxu0 0.0
    %181 = vmatprep.subr.mxu0 0.0
    %182 = vmatpush1.msra.mxu0 0.0
    %183 = vmatprep.subr.mxu0 0.0
    %184 = vmatpush1.msra.mxu0 %v147
    %185 = vmatprep.subr.mxu0 0.0
    %186 = vmatpush1.msra.mxu0 %v146
    %187 = vmatprep.subr.mxu0 0.0
    %188 = vmatpush1.msra.mxu0 %v145
    %189 = vmatprep.subr.mxu0 0.0
    %190 = vmatpush1.msra.mxu0 %v144
    %191 = vmatprep.subr.mxu0 0.0
    %192 = vmatpush2.msra.mxu0 0.0
    %193 = vmatprep.subr.mxu0 0.0
    %194 = vmatpush2.msra.mxu0 0.0
    %195 = vmatprep.subr.mxu0 0.0
    %196 = vmatpush2.msra.mxu0 0.0
    %197 = vmatprep.subr.mxu0 0.0
    %198 = vmatpush2.msra.mxu0 0.0
    %199 = vmatprep.subr.mxu0 0.0
    %200 = vmatpush2.msra.mxu0 0.0
    %201 = vmatprep.subr.mxu0 0.0
    %202 = vmatpush2.msra.mxu0 0.0
    %203 = vmatprep.subr.mxu0 0.0
    %204 = vmatpush2.msra.mxu0 0.0
    %205 = vmatprep.subr.mxu0 0.0
    %206 = vmatpush2.msra.mxu0 0.0
    %207 = vmatprep.subr.mxu0 0.0
    %208 = vmatpush2.msra.mxu0 0.0
    %209 = vmatprep.subr.mxu0 0.0
    %210 = vmatpush2.msra.mxu0 0.0
    %211 = vmatprep.subr.mxu0 0.0
    %212 = vmatpush2.msra.mxu0 0.0
    %213 = vmatprep.subr.mxu0 0.0
    %214 = vmatpush2.msra.mxu0 0.0
    %215 = vmatprep.subr.mxu0 0.0
    %216 = vmatpush2.msra.mxu0 0.0
    %217 = vmatprep.subr.mxu0 0.0
    %218 = vmatpush2.msra.mxu0 0.0
    %219 = vmatprep.subr.mxu0 0.0
    %220 = vmatpush2.msra.mxu0 0.0
    %221 = vmatprep.subr.mxu0 0.0
    %222 = vmatpush2.msra.mxu0 0.0
    %223 = vmatprep.mubr.f32.mxu0 0.0
    %224 = vmatmul.mubr.f32.gmra.mxu0 %v157
    %v225 = vpop.f32.mrf.mxu0
    %v226 = vadd.f32 %v153, %v225
    %v227 = vpop.f32.mrf.mxu0
    %228 = vdwg.mxu0
    %v229 = vtanh.pop %v226
    %v230 = vld [vmem:[%s6] sm:$0xff]
    %v231 = vld [vmem:[%s6 + $0x8] sm:$0xff]
    %v232 = vld [vmem:[%s6 + $0x10] sm:$0xff]
    %v233 = vld [vmem:[%s6 + $0x18] sm:$0xff]
    %v234 = vld [vmem:[%s7] sm:$0x1]
    %v236 = vlaneseq
    %v237 = vshrl.u32 %v236, 7
    %v238 = vsub.s32 0, %v237
    %v239 = vrot.slane %v234, %v238
    %v242 = vsel %vm155, %v229, 0
    %244 = vmatprep.subr.mxu0 0.0
    %245 = vmatpush1.msra.mxu0 0.0
    %246 = vmatprep.subr.mxu0 0.0
    %247 = vmatpush1.msra.mxu0 0.0
    %248 = vmatprep.subr.mxu0 0.0
    %249 = vmatpush1.msra.mxu0 0.0
    %250 = vmatprep.subr.mxu0 0.0
    %251 = vmatpush1.msra.mxu0 0.0
    %252 = vmatprep.subr.mxu0 0.0
    %253 = vmatpush1.msra.mxu0 0.0
    %254 = vmatprep.subr.mxu0 0.0
    %255 = vmatpush1.msra.mxu0 0.0
    %256 = vmatprep.subr.mxu0 0.0
    %257 = vmatpush1.msra.mxu0 0.0
    %258 = vmatprep.subr.mxu0 0.0
    %259 = vmatpush1.msra.mxu0 0.0
    %260 = vmatprep.subr.mxu0 0.0
    %261 = vmatpush1.msra.mxu0 0.0
    %262 = vmatprep.subr.mxu0 0.0
    %263 = vmatpush1.msra.mxu0 0.0
    %264 = vmatprep.subr.mxu0 0.0
    %265 = vmatpush1.msra.mxu0 0.0
    %266 = vmatprep.subr.mxu0 0.0
    %267 = vmatpush1.msra.mxu0 0.0
    %268 = vmatprep.subr.mxu0 0.0
    %269 = vmatpush1.msra.mxu0 %v233
    %270 = vmatprep.subr.mxu0 0.0
    %271 = vmatpush1.msra.mxu0 %v232
    %272 = vmatprep.subr.mxu0 0.0
    %273 = vmatpush1.msra.mxu0 %v231
    %274 = vmatprep.subr.mxu0 0.0
    %275 = vmatpush1.msra.mxu0 %v230
    %276 = vmatprep.subr.mxu0 0.0
    %277 = vmatpush2.msra.mxu0 0.0
    %278 = vmatprep.subr.mxu0 0.0
    %279 = vmatpush2.msra.mxu0 0.0
    %280 = vmatprep.subr.mxu0 0.0
    %281 = vmatpush2.msra.mxu0 0.0
    %282 = vmatprep.subr.mxu0 0.0
    %283 = vmatpush2.msra.mxu0 0.0
    %284 = vmatprep.subr.mxu0 0.0
    %285 = vmatpush2.msra.mxu0 0.0
    %286 = vmatprep.subr.mxu0 0.0
    %287 = vmatpush2.msra.mxu0 0.0
    %288 = vmatprep.subr.mxu0 0.0
    %289 = vmatpush2.msra.mxu0 0.0
    %290 = vmatprep.subr.mxu0 0.0
    %291 = vmatpush2.msra.mxu0 0.0
    %292 = vmatprep.subr.mxu0 0.0
    %293 = vmatpush2.msra.mxu0 0.0
    %294 = vmatprep.subr.mxu0 0.0
    %295 = vmatpush2.msra.mxu0 0.0
    %296 = vmatprep.subr.mxu0 0.0
    %297 = vmatpush2.msra.mxu0 0.0
    %298 = vmatprep.subr.mxu0 0.0
    %299 = vmatpush2.msra.mxu0 0.0
    %300 = vmatprep.subr.mxu0 0.0
    %301 = vmatpush2.msra.mxu0 0.0
    %302 = vmatprep.subr.mxu0 0.0
    %303 = vmatpush2.msra.mxu0 0.0
    %304 = vmatprep.subr.mxu0 0.0
    %305 = vmatpush2.msra.mxu0 0.0
    %306 = vmatprep.subr.mxu0 0.0
    %307 = vmatpush2.msra.mxu0 0.0
    %308 = vmatprep.mubr.f32.mxu0 0.0
    %309 = vmatmul.mubr.f32.gmra.mxu0 %v242
    %v310 = vpop.f32.mrf.mxu0
    %v311 = vadd.f32 %v239, %v310
    %v312 = vpop.f32.mrf.mxu0
    %313 = vdwg.mxu0
    %v314 = vmax.f32 %v311, 0.0
    %vm315 = vcmask 64512
    %316 = vst.msk [vmem:[#allocation7] sm:$0xff] %vm315, %v314
    // Predicated region
    $region42: #{mlp_lancer_forward.1} parent=1 // pred_check
      _
    $region43: #{mlp_lancer_forward.1} parent=1 // pred_check_branch
      %318 = sbr.rel (0) target = $region45
    $region44: #{mlp_lancer_forward.1} parent=1 // pred_region
      %s320 = ssub.s32 128, 128
      %321 = vsyncadd [#allocation4], %s320
      %s323 = sshll.u32 [#allocation7], 4
      %s324 = int_to_ptr.vmem [resolvable:$true] %s323
      %326 = dma.vmem_to_hbm [thread:$0]  %s324, 128, %s8, [#allocation4]
    $region45: #{mlp_lancer_forward.1} parent=1 // pred_fallthru
      _
    // Predicated region
    $region46: #{mlp_lancer_forward.1} parent=1 // pred_check
      _
    $region47: #{mlp_lancer_forward.1} parent=1 // pred_check_branch
      %328 = sbr.rel (0) target = $region49
    $region48: #{mlp_lancer_forward.1} parent=1 // pred_region
      %329 = dma.done [#allocation4], 128
    $region49: #{mlp_lancer_forward.1} parent=1 // pred_fallthru
      _
    %330 = vsyncpa [#allocation3], 1
    %331 = vsyncpa [#allocation6], 1
    %332 = vsyncpa [#allocation4], 1

</llo_original>
